<compile_context>
chip_gen: v5e
topology: v5e:2x2
jax: 0.10.0
libtpu: 0.0.40
codegen_flags: <defaults>
</compile_context>

<pallas_src>
import math
from functools import partial

import jax
import jax.numpy as jnp
import numpy as np
from jax.experimental import pallas as pl
from jax.experimental.pallas import tpu as pltpu


# ---------------------------------------------------------------------------
# Taps / weights (identical math to TrilinearUp._init_weights).
# ---------------------------------------------------------------------------
def _trilinear_taps():
    width = 4
    f = float(math.ceil(width / 2.0))
    c = float(width - 1) / (2.0 * f)
    u = [1.0 - abs(k / f - c) for k in range(width)]    # [0.25, 0.75, 0.75, 0.25]
    d_tap = 1.0 - abs(0.0 / f - c)                      # single depth tap -> 0.25
    return u, d_tap


def _make_module_weight(channels):
    """Deterministic weight, identical to TrilinearUp._init_weights: (C,1,1,4,4)."""
    width = hight = 4
    depth = 1
    f = float(math.ceil(width / 2.0))
    c = float(width - 1) / (2.0 * f)
    w = np.zeros((channels, 1, depth, hight, width), np.float32)
    for ww in range(width):
        for h in range(hight):
            for d in range(depth):
                w[..., d, h, ww] = (
                    (1 - abs(ww / f - c)) * (1 - abs(h / f - c)) * (1 - abs(d / f - c))
                )
    return w


def _column_operator(width_in, u):
    """(W, 2W) matrix M: z = r @ M is the stride-2 transposed-conv column pass with
    even/odd output columns already interleaved (halo terms simply have no entry)."""
    m = np.zeros((width_in, 2 * width_in), np.float32)
    for w in range(width_in):
        m[w, 2 * w] += u[1]                 # even col 2w      <- 0.75 * r[w]
        m[w, 2 * w + 1] += u[2]             # odd  col 2w+1    <- 0.75 * r[w]
        if w + 1 < width_in:
            m[w + 1, 2 * w + 1] += u[0]     # odd  col 2w+1    <- 0.25 * r[w+1]
            m[w, 2 * w + 2] += u[3]         # even col 2(w+1)  <- 0.25 * r[w]
    return m


def _fused_operator(W, G, u, d_tap):
    """((G+2)W, 4GW) operator for a lane-group of G input rows: row taps, column taps,
    even/odd row+column interleave, and the two cross-group halo row-blocks
    (previous super-row's last row, next super-row's first row).  Exact in bf16."""
    m = _column_operator(W, u)
    center = d_tap * u[1]                               # 0.1875
    nbr = d_tap * u[0]                                  # 0.0625
    op = np.zeros(((G + 2) * W, 4 * G * W), np.float32)

    def iseg(j):
        return slice(j * W, (j + 1) * W)

    def oseg(s):
        return slice(s * 2 * W, (s + 1) * 2 * W)

    for j in range(G):
        op[iseg(j), oseg(2 * j)] += center * m           # even output row 2j
        op[iseg(j), oseg(2 * j + 1)] += center * m       # odd  output row 2j+1
        if j + 1 < G:
            op[iseg(j), oseg(2 * (j + 1))] += nbr * m    # x[j] is up-neighbour of row j+1
        if j - 1 >= 0:
            op[iseg(j), oseg(2 * (j - 1) + 1)] += nbr * m  # x[j] is down-neighbour of row j-1
    op[iseg(G), oseg(0)] += nbr * m                      # halo: prev super-row's last row
    op[iseg(G + 1), oseg(2 * G - 1)] += nbr * m          # halo: next super-row's first row
    return op


# ---------------------------------------------------------------------------
# Tiling choices.
# ---------------------------------------------------------------------------
def _pick_group(H, W):
    """Largest divisor G of H with (G+2)*W <= 128: fused operand stays inside one
    128-wide MXU contraction block (v5e) / half a 256 block (v6e/v7x), output
    super-rows become lane-dense for small W."""
    g = 1
    for cand in range(1, H + 1):
        if H % cand == 0 and (cand + 2) * W <= 128:
            g = cand
    return g


def _pick_block_rows(bhg, P, out_w, itemsize, target_bytes=2 << 20):
    """Super-rows per grid step: slab- and sublane-aligned (multiple of lcm(P, 8)),
    ~2 MiB output tile, capped so the parallel grid has >= 4 steps (2 per v7x core)."""
    unit = (P * 8) // math.gcd(P, 8)                     # lcm(P, 8)
    if bhg <= unit:
        return bhg                                       # single full-array block
    rows = max(unit, (target_bytes // (out_w * itemsize)) // unit * unit)
    min_steps = 4
    cap = ((bhg + min_steps - 1) // min_steps + unit - 1) // unit * unit
    return max(unit, min(rows, cap))


# ---------------------------------------------------------------------------
# Kernel.
# ---------------------------------------------------------------------------
def _trilinear_up_kernel(x_ref, op_ref, o_ref, *, seg_w, n_seg, rows_per_slab):
    rows = x_ref.shape[0]
    x = x_ref[...]                                       # (Rg, G*W) f32

    # Cross-super-row halo segments: +-1 sublane shift of the narrow W-wide edge
    # segments only (no staging scratch, no extra VMEM stores).
    last_seg = x[:, (n_seg - 1) * seg_w:]                # (Rg, W)
    first_seg = x[:, :seg_w]                             # (Rg, W)
    up = jnp.roll(last_seg, 1, axis=0)                   # prev super-row's last input row
    dn = jnp.roll(first_seg, -1, axis=0)                 # next super-row's first input row

    # Slab-boundary masks computed in-kernel (no (R,1) HBM side inputs).  Division-free
    # f32 "mod": iota < 2^13 so the +0.5 guard keeps the floor exact.  jnp.where (not a
    # bare multiply) so garbage rows of a partial last block can never leak NaN/Inf
    # into valid rows through the roll wrap-around.
    i = jax.lax.broadcasted_iota(jnp.int32, (rows, seg_w), 0).astype(jnp.float32)
    slab = jnp.floor((i + 0.5) * (1.0 / rows_per_slab))
    pos = i - slab * float(rows_per_slab)                # row index within its slab
    up = jnp.where(pos > 0.5, up, 0.0)                   # h == 0   -> no up neighbour
    dn = jnp.where(pos < rows_per_slab - 1.5, dn, 0.0)   # h == H-1 -> no down neighbour

    # One fused MXU matmul: row taps + column taps + even/odd interleave + halos all
    # live in the constant operator.  3-term bf16 operand split keeps ~f32 accuracy
    # (operator entries are exact in bf16).
    a = jnp.concatenate([x, up, dn], axis=-1)            # (Rg, (G+2)*W) f32
    m = op_ref[...]
    p0 = a.astype(jnp.bfloat16)
    r1 = a - p0.astype(jnp.float32)
    p1 = r1.astype(jnp.bfloat16)
    p2 = (r1 - p1.astype(jnp.float32)).astype(jnp.bfloat16)
    z = jnp.dot(p0, m, preferred_element_type=jnp.float32)
    z = z + jnp.dot(p1, m, preferred_element_type=jnp.float32)
    z = z + jnp.dot(p2, m, preferred_element_type=jnp.float32)

    # Single unmasked, lane-dense store (biggest measured out_spec lever).
    o_ref[...] = z.astype(o_ref.dtype)


# ---------------------------------------------------------------------------
# Wrapper.
# ---------------------------------------------------------------------------
def trilinear_up(x):
    """Pallas TrilinearUp forward.  x: (N, C, D, H, W) f32 -> (N, C, D, 2H, 2W)."""
    N, C, D, H, W = x.shape
    u, d_tap = _trilinear_taps()

    G = _pick_group(H, W)                                # rows packed into the lane axis
    P = H // G                                           # super-rows per (N,C,D) slab
    gw = G * W
    out_w = 4 * gw
    bhg = (N * C * D) * P                                # total super-rows
    x2 = x.reshape(bhg, gw)                              # free row-major reshape

    op = jnp.asarray(_fused_operator(W, G, u, d_tap), dtype=jnp.bfloat16)

    itemsize = jnp.dtype(x.dtype).itemsize
    Rg = _pick_block_rows(bhg, P, out_w, itemsize)
    grid = (pl.cdiv(bhg, Rg),)

    out = pl.pallas_call(
        partial(_trilinear_up_kernel, seg_w=W, n_seg=G, rows_per_slab=P),
        out_shape=jax.ShapeDtypeStruct((bhg, out_w), x.dtype),
        grid=grid,
        in_specs=[
            pl.BlockSpec((Rg, gw), lambda i: (i, 0)),
            pl.BlockSpec(((G + 2) * W, out_w), lambda i: (0, 0)),   # constant operator
        ],
        out_specs=pl.BlockSpec((Rg, out_w), lambda i: (i, 0)),
        compiler_params=pltpu.CompilerParams(
            dimension_semantics=("parallel",),
            vmem_limit_bytes=32 * 1024 * 1024,
        ),
    )(x2, op)

    # (B*H/G, 4GW) -> (N, C, D, 2H, 2W): pure row-major merge/split, no data movement.
    return out.reshape(N, C, D, 2 * H, 2 * W)


# ---------------------------------------------------------------------------
# Reference + self-test.
# ---------------------------------------------------------------------------
def _reference(x):
    """conv_transpose3d == conv_general_dilated with lhs_dilation = stride,
    padding = k-1-p, spatially flipped kernel."""
    C = x.shape[1]
    w = _make_module_weight(C)                           # (C, 1, 1, 4, 4)
    w_flip = jnp.asarray(np.ascontiguousarray(w[:, :, ::-1, ::-1, ::-1]))
    return jax.lax.conv_general_dilated(
        x, w_flip,
        window_strides=(1, 1, 1),
        padding=((0, 0), (2, 2), (2, 2)),
        lhs_dilation=(1, 2, 2),
        dimension_numbers=("NCDHW", "OIDHW", "NCDHW"),
        feature_group_count=C,
        precision=jax.lax.Precision.HIGHEST,
    )


if __name__ == "__main__":
    key = jax.random.PRNGKey(0)
    fwd = jax.jit(trilinear_up)

    # Shape 1: power-of-two case (G=4, P=4, 4 full grid blocks).
    # Shape 2: non-power-of-two H and a partial last grid block (locks in the
    #          OOB-masking path flagged in the review).
    shapes = [(2, 4, 4, 16, 16), (1, 3, 5, 12, 16)]
    for idx, shp in enumerate(shapes):
        k = jax.random.fold_in(key, idx)
        x = jax.random.normal(k, shp, dtype=jnp.float32)
        y = jax.block_until_ready(fwd(x))
        ref = _reference(x)
        N, C, D, H, W = shp
        assert y.shape == (N, C, D, 2 * H, 2 * W), y.shape
        assert np.allclose(np.asarray(y), np.asarray(ref), atol=1e-5, rtol=1e-5)

    print("KERNEL_OK")
</pallas_src>

<mosaic_0001>
module attributes {stable_mosaic.version = 11 : i64} {
  func.func @_trilinear_up_kernel(%arg0: i32, %arg1: memref<32x64xf32, #tpu.memory_space<vmem>>, %arg2: memref<96x256xbf16, #tpu.memory_space<vmem>>, %arg3: memref<32x256xf32, #tpu.memory_space<vmem>>) attributes {dimension_semantics = [#tpu.dimension_semantics<parallel>], iteration_bounds = array<i64: 4>, scalar_prefetch = 0 : i64, scratch_operands = 0 : i64, tpu.core_type = #tpu.core_type<tc>, window_params = [{transform_indices = @transform_0, window_bounds = array<i64: 32, 64>}, {pipeline_mode = #tpu.pipeline_mode<synchronous>, transform_indices = @transform_1, window_bounds = array<i64: 96, 256>}, {transform_indices = @transform_2, window_bounds = array<i64: 32, 256>}]} {
    %c0 = arith.constant 0 : index
    %c0_0 = arith.constant 0 : index
    %0 = vector.load %arg1[%c0, %c0_0] : memref<32x64xf32, #tpu.memory_space<vmem>>, vector<32x64xf32>
    %1 = vector.extract_strided_slice %0 {offsets = [0, 48], sizes = [32, 16], strides = [1, 1]} : vector<32x64xf32> to vector<32x16xf32>
    %2 = vector.extract_strided_slice %0 {offsets = [0, 0], sizes = [32, 16], strides = [1, 1]} : vector<32x64xf32> to vector<32x16xf32>
    %3 = vector.extract_strided_slice %1 {offsets = [31, 0], sizes = [1, 16], strides = [1, 1]} : vector<32x16xf32> to vector<1x16xf32>
    %4 = vector.extract_strided_slice %1 {offsets = [0, 0], sizes = [31, 16], strides = [1, 1]} : vector<32x16xf32> to vector<31x16xf32>
    %5 = tpu.concatenate %3, %4 in 0 : vector<1x16xf32>, vector<31x16xf32> -> vector<32x16xf32>
    %6 = vector.extract_strided_slice %2 {offsets = [1, 0], sizes = [31, 16], strides = [1, 1]} : vector<32x16xf32> to vector<31x16xf32>
    %7 = vector.extract_strided_slice %2 {offsets = [0, 0], sizes = [1, 16], strides = [1, 1]} : vector<32x16xf32> to vector<1x16xf32>
    %8 = tpu.concatenate %6, %7 in 0 : vector<31x16xf32>, vector<1x16xf32> -> vector<32x16xf32>
    %9 = tpu.iota {dimensions = array<i32: 0>} : vector<32x16xi32>
    %10 = arith.sitofp %9 : vector<32x16xi32> to vector<32x16xf32>
    %cst = arith.constant 5.000000e-01 : f32
    %11 = vector.broadcast %cst : f32 to vector<32x16xf32>
    %12 = arith.addf %10, %11 : vector<32x16xf32>
    %cst_1 = arith.constant 2.500000e-01 : f32
    %13 = vector.broadcast %cst_1 : f32 to vector<32x16xf32>
    %14 = arith.mulf %12, %13 : vector<32x16xf32>
    %15 = math.floor %14 : vector<32x16xf32>
    %cst_2 = arith.constant 4.000000e+00 : f32
    %16 = vector.broadcast %cst_2 : f32 to vector<32x16xf32>
    %17 = arith.mulf %15, %16 : vector<32x16xf32>
    %18 = arith.subf %10, %17 : vector<32x16xf32>
    %cst_3 = arith.constant 5.000000e-01 : f32
    %19 = vector.broadcast %cst_3 : f32 to vector<32x16xf32>
    %20 = arith.cmpf ogt, %18, %19 : vector<32x16xf32>
    %cst_4 = arith.constant 0.000000e+00 : f32
    %21 = vector.broadcast %cst_4 : f32 to vector<32x16xf32>
    %22 = arith.select %20, %5, %21 : vector<32x16xi1>, vector<32x16xf32>
    %cst_5 = arith.constant 2.500000e+00 : f32
    %23 = vector.broadcast %cst_5 : f32 to vector<32x16xf32>
    %24 = arith.cmpf olt, %18, %23 : vector<32x16xf32>
    %cst_6 = arith.constant 0.000000e+00 : f32
    %25 = vector.broadcast %cst_6 : f32 to vector<32x16xf32>
    %26 = arith.select %24, %8, %25 : vector<32x16xi1>, vector<32x16xf32>
    %27 = tpu.concatenate %0, %22, %26 in 1 : vector<32x64xf32>, vector<32x16xf32>, vector<32x16xf32> -> vector<32x96xf32>
    %c0_7 = arith.constant 0 : index
    %c0_8 = arith.constant 0 : index
    %28 = vector.load %arg2[%c0_7, %c0_8] : memref<96x256xbf16, #tpu.memory_space<vmem>>, vector<96x256xbf16>
    %29 = arith.truncf %27 : vector<32x96xf32> to vector<32x96xbf16>
    %30 = arith.extf %29 : vector<32x96xbf16> to vector<32x96xf32>
    %31 = arith.subf %27, %30 : vector<32x96xf32>
    %32 = arith.truncf %31 : vector<32x96xf32> to vector<32x96xbf16>
    %33 = arith.extf %32 : vector<32x96xbf16> to vector<32x96xf32>
    %34 = arith.subf %31, %33 : vector<32x96xf32>
    %35 = arith.truncf %34 : vector<32x96xf32> to vector<32x96xbf16>
    %cst_9 = arith.constant dense<0.000000e+00> : vector<32x256xf32>
    %36 = tpu.matmul %29, %28, %cst_9 {dimension_numbers = #tpu.dot_dimension_numbers<[1], [0], [0], [1], [0, 0, 1, 1], [], []>} : vector<32x96xbf16>, vector<96x256xbf16>, vector<32x256xf32> -> vector<32x256xf32>
    %cst_10 = arith.constant dense<0.000000e+00> : vector<32x256xf32>
    %37 = tpu.matmul %32, %28, %cst_10 {dimension_numbers = #tpu.dot_dimension_numbers<[1], [0], [0], [1], [0, 0, 1, 1], [], []>} : vector<32x96xbf16>, vector<96x256xbf16>, vector<32x256xf32> -> vector<32x256xf32>
    %38 = arith.addf %36, %37 : vector<32x256xf32>
    %cst_11 = arith.constant dense<0.000000e+00> : vector<32x256xf32>
    %39 = tpu.matmul %35, %28, %cst_11 {dimension_numbers = #tpu.dot_dimension_numbers<[1], [0], [0], [1], [0, 0, 1, 1], [], []>} : vector<32x96xbf16>, vector<96x256xbf16>, vector<32x256xf32> -> vector<32x256xf32>
    %40 = arith.addf %38, %39 : vector<32x256xf32>
    %c0_12 = arith.constant 0 : index
    %c0_13 = arith.constant 0 : index
    %41 = vector.load %arg3[%c0_12, %c0_13] : memref<32x256xf32, #tpu.memory_space<vmem>>, vector<32x256xf32>
    tpu.vector_store %arg3[%c0_12, %c0_13], %40 {strides = array<i32>} : memref<32x256xf32, #tpu.memory_space<vmem>>, vector<32x256xf32>,
    return
  }
  func.func @transform_0(%arg0: i32) -> (i32, i32) {
    %c0_i32 = arith.constant 0 : i32
    %c0_i32_0 = arith.constant 0 : i32
    return %arg0, %c0_i32 : i32, i32
  }
  func.func @transform_1(%arg0: i32) -> (i32, i32) {
    %c0_i32 = arith.constant 0 : i32
    %c0_i32_0 = arith.constant 0 : i32
    %c0_i32_1 = arith.constant 0 : i32
    return %c0_i32, %c0_i32_0 : i32, i32
  }
  func.func @transform_2(%arg0: i32) -> (i32, i32) {
    %c0_i32 = arith.constant 0 : i32
    %c0_i32_0 = arith.constant 0 : i32
    return %arg0, %c0_i32 : i32, i32
  }
}

</mosaic_0001>

<llo_original>
// kernel: trilinear_up.1
$region0: #{trilinear_up.1}
  #allocation0 [shape = 'u32[]', space=smem, size = 0x4, offset = 0x4, fixed_abs, tag = 'smem constant byte address 0x4 - core index']
  #allocation1 [shape = 'u32[72,128]{1,0:T(1,128)}', space=vmem, size = 0x9000, scoped, tag = 'internal scratch']
  %s0 = inlined_call_operand.vmem [shape: f32[128,64], index: 0, kind: input, shape index: {}]
  %s1 = inlined_call_operand.vmem [shape: bf16[96,256], index: 1, kind: input, shape index: {}]
  %s2 = inlined_call_operand.vmem [shape: f32[128,256], index: 2, kind: output, shape index: {}]
  %s3 = sld [smem:[#allocation0]]
  $region41: #{trilinear_up.1} parent=0
    _
  %s5 = ssub.s32 1, %s3
  %s6 = scalar_select 0, %s5, %s3
  loop: start=0, step=1, limit=6
  $region2: #{trilinear_up.1} parent=0 // loop_pre_header
    _
  $region3: #{trilinear_up.1} parent=0 // loop_header
    %s8 = sphi 0, %s12
    %p9 = scmp.ge.s32.totalorder %s8, 6
    %s18 = sphi 0, %s20
    %s21 = sphi 0, %s18
    %s22 = sphi 0, %s21
    %s38 = sphi 0, %s22
    %s42 = sphi 0, %s42
    %s44 = sphi 0, %s42
    %s45 = sphi 0, %s44
    %s59 = sphi 0, %s45
    %s65 = sphi 0, %s67
    %s68 = sphi 0, %s65
    %s69 = sphi 0, %s68
    %s85 = sphi 0, %s69
  $region4: #{trilinear_up.1} parent=0 // loop_header_branch
    %11 = sbr.rel (%p9) target = $region8
  $region5: #{trilinear_up.1} parent=0 // loop_body
    %s13 = ssub.s32 %s8, 1
    %s14 = ssub.s32 %s8, 2
    %s15 = sadd.s32 %s8, 1
    %s16 = ssub.s32 %s8, %s15
    %p17 = scmp.eq.s32.totalorder %s16, 0
    %s19 = sadd.s32 %s18, 1
    %s20 = scalar_select %p17, %s18, %s19
    %p23 = pneg %p17
    %p24 = scmp.eq.s32.totalorder %s8, 3
    %p25 = por %p23, %p24
    %p26 = scmp.ne.s32.totalorder %s18, %s21
    %p27 = scmp.eq.s32.totalorder %s8, 0
    %p28 = por %p26, %p27
    %p29 = scmp.ne.s32.totalorder %s18, %s21
    %p30 = scmp.eq.s32.totalorder %s13, 3
    %p31 = por %p29, %p30
    %p32 = scmp.ne.s32.totalorder %s21, %s22
    %p33 = scmp.eq.s32.totalorder %s13, 0
    %p34 = por %p32, %p33
    %p35 = scmp.ne.s32.totalorder %s21, %s22
    %p36 = scmp.eq.s32.totalorder %s14, 3
    %p37 = por %p35, %p36
    %p39 = scmp.ne.s32.totalorder %s22, %s38
    %p40 = scmp.eq.s32.totalorder %s14, 0
    %p41 = por %p39, %p40
    %s43 = sadd.s32 %s42, 1
    %p46 = scmp.eq.s32.totalorder %s8, 3
    %p47 = scmp.ne.s32.totalorder %s42, %s44
    %p48 = scmp.eq.s32.totalorder %s8, 0
    %p49 = por %p47, %p48
    %p50 = scmp.ne.s32.totalorder %s42, %s44
    %p51 = scmp.eq.s32.totalorder %s13, 3
    %p52 = por %p50, %p51
    %p53 = scmp.ne.s32.totalorder %s44, %s45
    %p54 = scmp.eq.s32.totalorder %s13, 0
    %p55 = por %p53, %p54
    %p56 = scmp.ne.s32.totalorder %s44, %s45
    %p57 = scmp.eq.s32.totalorder %s14, 3
    %p58 = por %p56, %p57
    %p60 = scmp.ne.s32.totalorder %s45, %s59
    %p61 = scmp.eq.s32.totalorder %s14, 0
    %p62 = por %p60, %p61
    %s63 = ssub.s32 %s8, %s15
    %p64 = scmp.eq.s32.totalorder %s63, 0
    %s66 = sadd.s32 %s65, 1
    %s67 = scalar_select %p64, %s65, %s66
    %p70 = pneg %p64
    %p71 = scmp.eq.s32.totalorder %s8, 3
    %p72 = por %p70, %p71
    %p73 = scmp.ne.s32.totalorder %s65, %s68
    %p74 = scmp.eq.s32.totalorder %s8, 0
    %p75 = por %p73, %p74
    %p76 = scmp.ne.s32.totalorder %s65, %s68
    %p77 = scmp.eq.s32.totalorder %s13, 3
    %p78 = por %p76, %p77
    %p79 = scmp.ne.s32.totalorder %s68, %s69
    %p80 = scmp.eq.s32.totalorder %s13, 0
    %p81 = por %p79, %p80
    %p82 = scmp.ne.s32.totalorder %s68, %s69
    %p83 = scmp.eq.s32.totalorder %s14, 3
    %p84 = por %p82, %p83
    %p86 = scmp.ne.s32.totalorder %s69, %s85
    %p87 = scmp.eq.s32.totalorder %s14, 0
    %p88 = por %p86, %p87
    %p89 = scmp.le.s32.totalorder 1, %s8
    %p90 = scmp.lt.s32.totalorder %s8, 5
    %p91 = pnand %p89, %p90
    %p92 = pneg %p91
    // Predicated region
    $region9: #{trilinear_up.1} parent=5 // pred_check
      _
    $region10: #{trilinear_up.1} parent=5 // pred_check_branch
      %94 = sbr.rel (%p91) target = $region12
    $region11: #{trilinear_up.1} parent=5 // pred_region
      %s95 = ssub.s32 %s8, 1
      // Predicated region
      $region13: #{trilinear_up.1} parent=11 // pred_check
        %p96 = pneg %p55
      $region14: #{trilinear_up.1} parent=11 // pred_check_branch
        %98 = sbr.rel (%p96) target = $region16
      $region15: #{trilinear_up.1} parent=11 // pred_region
        _
      $region16: #{trilinear_up.1} parent=11 // pred_fallthru
        _
    $region12: #{trilinear_up.1} parent=5 // pred_fallthru
      _
    %p99 = scmp.lt.s32.totalorder %s8, 4
    // Predicated region
    $region17: #{trilinear_up.1} parent=5 // pred_check
      %p100 = pneg %p99
    $region18: #{trilinear_up.1} parent=5 // pred_check_branch
      %102 = sbr.rel (%p100) target = $region20
    $region19: #{trilinear_up.1} parent=5 // pred_region
      // Predicated region
      $region21: #{trilinear_up.1} parent=19 // pred_check
        %p103 = pneg %p28
      $region22: #{trilinear_up.1} parent=19 // pred_check_branch
        %105 = sbr.rel (%p103) target = $region24
      $region23: #{trilinear_up.1} parent=19 // pred_region
        %s106 = smul.u32 4, %s8
        %p107 = scmp.lt.s32.totalorder %s106, 15
        %s108 = scalar_select %p107, %s106, 15
        %s109 = smul.addr %s108, 8
        %s110 = scalar_lea.vmem %s0, %s109
        %s111 = smul.u32 4, %s8
      $region24: #{trilinear_up.1} parent=19 // pred_fallthru
        _
    $region20: #{trilinear_up.1} parent=5 // pred_fallthru
      _
    %p112 = scmp.le.s32.totalorder 1, %s8
    %p113 = scmp.lt.s32.totalorder %s8, 5
    %p114 = pnand %p112, %p113
    %p115 = pneg %p114
    // Predicated region
    $region25: #{trilinear_up.1} parent=5 // pred_check
      _
    $region26: #{trilinear_up.1} parent=5 // pred_check_branch
      %117 = sbr.rel (%p114) target = $region28
    $region27: #{trilinear_up.1} parent=5 // pred_region
      %s118 = ssub.s32 %s8, 1
      %s119 = smul.u32 4, %s13
      %p120 = scmp.lt.s32.totalorder %s119, 15
      %s121 = scalar_select %p120, %s119, 15
      %s122 = smul.addr %s121, 8
      %s123 = scalar_lea.vmem %s0, %s122
      %p124 = pneg %p34
      %p125 = pneg %p31
      %p126 = pneg %p55
      %p127 = pneg %p52
      %p128 = pneg %p81
      %p129 = pneg %p78
      %s130 = smul.u32 4, %s13
      %p131 = scmp.lt.s32.totalorder %s130, 15
      %s132 = scalar_select %p131, %s130, 15
      %s133 = smul.addr %s132, 2
      %s134 = smul.addr %s133, 8
      %s135 = scalar_lea.vmem %s2, %s134
      %s136 = smul.u32 4, %s13
      %p137 = scmp.lt.s32.totalorder %s136, 15
      %s138 = scalar_select %p137, %s136, 15
      %s139 = smul.addr %s138, 8
      %s140 = scalar_lea.vmem %s0, %s139
      %s141 = smul.u32 4, %s13
      %s142 = smul.u32 4, %s13
      %p143 = scmp.lt.s32.totalorder %s142, 15
      %s144 = scalar_select %p143, %s142, 15
      %s145 = smul.addr %s144, 2
      %s146 = smul.addr %s145, 8
      %s147 = scalar_lea.vmem %s2, %s146
      %s148 = smul.u32 4, %s13
      %v150 = vld [vmem:[%s140] sm:$0xff]
      %v151 = vld [vmem:[%s140 + $0x8] sm:$0xff]
      %v152 = vld [vmem:[%s140 + $0x10] sm:$0xff]
      %v153 = vld [vmem:[%s140 + $0x18] sm:$0xff]
      %v155 = vrot.slane %v153, 7
      %vm160 = vcmask 1040384
      %v161 = vrot.slane %v150, 7
      %v162 = vrot.slane %v151, 7
      %v163 = vsel %vm160, %v161, %v162
      %v164 = vrot.slane %v152, 7
      %v165 = vsel %vm160, %v162, %v164
      %v166 = vsel %vm160, %v164, %v155
      %v171 = vsel %vm160, %v155, %v161
      %vm172 = vcmask 1046528
      %v173 = vrot.slane %v150, 1
      %v174 = vrot.slane %v151, 1
      %v175 = vsel %vm172, %v173, %v174
      %v176 = vrot.slane %v152, 1
      %v177 = vsel %vm172, %v174, %v176
      %v178 = vrot.slane %v153, 1
      %v179 = vsel %vm172, %v176, %v178
      %v185 = vsel %vm172, %v178, %v173
      %v186 = vlaneseq
      %v187 = vshrl.u32 %v186, 7
      %v188 = vadd.s32 %v187, 8
      %v189 = vadd.s32 %v187, 16
      %v190 = vadd.s32 %v187, 24
      %v191 = vcvt.s32.f32 %v187
      %v192 = vcvt.s32.f32 %v188
      %v193 = vcvt.s32.f32 %v189
      %v194 = vcvt.s32.f32 %v190
      %v195 = vadd.f32 %v191, 0.5
      %v196 = vadd.f32 %v192, 0.5
      %v197 = vadd.f32 %v193, 0.5
      %v198 = vadd.f32 %v194, 0.5
      %v199 = vmul.f32 %v195, 0.25
      %v200 = vmul.f32 %v196, 0.25
      %v201 = vmul.f32 %v197, 0.25
      %v202 = vmul.f32 %v198, 0.25
      %v203 = vfloor.f32 %v199
      %v204 = vfloor.f32 %v200
      %v205 = vfloor.f32 %v201
      %v206 = vfloor.f32 %v202
      %v207 = vmul.f32 %v203, 4.0
      %v208 = vmul.f32 %v204, 4.0
      %v209 = vmul.f32 %v205, 4.0
      %v210 = vmul.f32 %v206, 4.0
      %v211 = vsub.f32 %v191, %v207
      %v212 = vsub.f32 %v192, %v208
      %v213 = vsub.f32 %v193, %v209
      %v214 = vsub.f32 %v194, %v210
      %vm215 = vcmp.gt.f32.partialorder %v211, 0.5
      %vm216 = vcmp.gt.f32.partialorder %v212, 0.5
      %vm217 = vcmp.gt.f32.partialorder %v213, 0.5
      %vm218 = vcmp.gt.f32.partialorder %v214, 0.5
      %v219 = vsel %vm215, %v171, 0.0
      %v220 = vsel %vm216, %v163, 0.0
      %v221 = vsel %vm217, %v165, 0.0
      %v222 = vsel %vm218, %v166, 0.0
      %vm223 = vcmp.lt.f32.partialorder %v211, 2.5
      %vm224 = vcmp.lt.f32.partialorder %v212, 2.5
      %vm225 = vcmp.lt.f32.partialorder %v213, 2.5
      %vm226 = vcmp.lt.f32.partialorder %v214, 2.5
      %v227 = vsel %vm223, %v175, 0.0
      %v228 = vsel %vm224, %v177, 0.0
      %v229 = vsel %vm225, %v179, 0.0
      %v230 = vsel %vm226, %v185, 0.0
      %235 = vrot.lane.b32.xlu0 %v219, 16
      %v236 = vpop.permute.xlu0 %235
      %237 = vrot.lane.b32.xlu0 %v220, 16
      %v238 = vpop.permute.xlu0 %237
      %239 = vrot.lane.b32.xlu0 %v221, 16
      %v240 = vpop.permute.xlu0 %239
      %241 = vrot.lane.b32.xlu0 %v222, 16
      %v242 = vpop.permute.xlu0 %241
      %251 = vrot.lane.b32.xlu0 %v227, 80
      %v252 = vpop.permute.xlu0 %251
      %253 = vrot.lane.b32.xlu0 %v228, 80
      %v254 = vpop.permute.xlu0 %253
      %255 = vrot.lane.b32.xlu0 %v229, 80
      %v256 = vpop.permute.xlu0 %255
      %257 = vrot.lane.b32.xlu0 %v230, 80
      %v258 = vpop.permute.xlu0 %257
      %vm263 = vcmask 523264
      %v264 = vsel %vm263, %v150, %v236
      %v265 = vsel %vm263, %v151, %v238
      %v266 = vsel %vm263, %v152, %v240
      %v267 = vsel %vm263, %v153, %v242
      %vm268 = vcmask 654336
      %v269 = vsel %vm268, %v264, %v252
      %v270 = vsel %vm268, %v265, %v254
      %v271 = vsel %vm268, %v266, %v256
      %v272 = vsel %vm268, %v267, %v258
      %v273 = vld [vmem:[%s1] sm:$0xff]
      %v274 = vld [vmem:[%s1 + $0x8] sm:$0xff]
      %v275 = vld [vmem:[%s1 + $0x10] sm:$0xff]
      %v276 = vld [vmem:[%s1 + $0x18] sm:$0xff]
      %v277 = vld [vmem:[%s1 + $0x20] sm:$0xff]
      %v278 = vld [vmem:[%s1 + $0x28] sm:$0xff]
      %v279 = vld [vmem:[%s1 + $0x30] sm:$0xff]
      %v280 = vld [vmem:[%s1 + $0x38] sm:$0xff]
      %v281 = vld [vmem:[%s1 + $0x40] sm:$0xff]
      %v282 = vld [vmem:[%s1 + $0x48] sm:$0xff]
      %v283 = vld [vmem:[%s1 + $0x50] sm:$0xff]
      %v284 = vld [vmem:[%s1 + $0x58] sm:$0xff]
      %v285 = vpack.c.bf16 %v269, %v269
      %v286 = vpack.c.bf16 %v270, %v270
      %v287 = vpack.c.bf16 %v271, %v271
      %v288 = vpack.c.bf16 %v272, %v272
      %v289 = vunpack.c.l.bf16 %v285
      %v290 = vunpack.c.l.bf16 %v286
      %v291 = vunpack.c.l.bf16 %v287
      %v292 = vunpack.c.l.bf16 %v288
      %v293 = vsub.f32 %v269, %v289
      %v294 = vsub.f32 %v270, %v290
      %v295 = vsub.f32 %v271, %v291
      %v296 = vsub.f32 %v272, %v292
      %v297 = vpack.c.bf16 %v293, %v293
      %v298 = vpack.c.bf16 %v294, %v294
      %v299 = vpack.c.bf16 %v295, %v295
      %v300 = vpack.c.bf16 %v296, %v296
      %v301 = vunpack.c.l.bf16 %v297
      %v302 = vunpack.c.l.bf16 %v298
      %v303 = vunpack.c.l.bf16 %v299
      %v304 = vunpack.c.l.bf16 %v300
      %v305 = vsub.f32 %v293, %v301
      %v306 = vsub.f32 %v294, %v302
      %v307 = vsub.f32 %v295, %v303
      %v308 = vsub.f32 %v296, %v304
      %v309 = vpack.c.bf16 %v306, %v305
      %v310 = vpack.c.bf16 %v308, %v307
      %v315 = vunpack.c.l.b16 %v297
      %v316 = vunpack.c.l.b16 %v298
      %v317 = vunpack.c.l.b16 %v299
      %v318 = vunpack.c.l.b16 %v300
      %v319 = vpack.c.b16 %v316, %v315
      %v320 = vpack.c.b16 %v318, %v317
      %v333 = vunpack.c.l.b16 %v273
      %v334 = vunpack.c.h.b16 %v273
      %v335 = vunpack.c.l.b16 %v274
      %v336 = vunpack.c.h.b16 %v274
      %v337 = vunpack.c.l.b16 %v275
      %v338 = vunpack.c.h.b16 %v275
      %v339 = vunpack.c.l.b16 %v276
      %v340 = vunpack.c.h.b16 %v276
      %v341 = vunpack.c.l.b16 %v277
      %v342 = vunpack.c.h.b16 %v277
      %v343 = vunpack.c.l.b16 %v278
      %v344 = vunpack.c.h.b16 %v278
      %v345 = vunpack.c.l.b16 %v279
      %v346 = vunpack.c.h.b16 %v279
      %v347 = vunpack.c.l.b16 %v280
      %v348 = vunpack.c.h.b16 %v280
      %v349 = vunpack.c.l.b16 %v281
      %v350 = vunpack.c.h.b16 %v281
      %v351 = vunpack.c.l.b16 %v282
      %v352 = vunpack.c.h.b16 %v282
      %v353 = vunpack.c.l.b16 %v283
      %v354 = vunpack.c.h.b16 %v283
      %v355 = vunpack.c.l.b16 %v284
      %v356 = vunpack.c.h.b16 %v284
      %v357 = vpack.c.b16 %v335, %v333
      %v358 = vpack.c.b16 %v336, %v334
      %v359 = vpack.c.b16 %v339, %v337
      %v360 = vpack.c.b16 %v340, %v338
      %v361 = vpack.c.b16 %v343, %v341
      %v362 = vpack.c.b16 %v344, %v342
      %v363 = vpack.c.b16 %v347, %v345
      %v364 = vpack.c.b16 %v348, %v346
      %v365 = vpack.c.b16 %v351, %v349
      %v366 = vpack.c.b16 %v352, %v350
      %v367 = vpack.c.b16 %v355, %v353
      %v368 = vpack.c.b16 %v356, %v354
      %vm381 = vcmask 785408
      %v383 = vsel %vm381, %v319, 0
      %v386 = vsel %vm381, %v320, 0
      %388 = vmatpush.bf16.msra.mxu0 0
      %389 = vmatpush.bf16.msra.mxu0 0
      %390 = vmatpush.bf16.msra.mxu0 %v367
      %391 = vmatpush.bf16.msra.mxu0 %v365
      %392 = vmatpush.bf16.msra.mxu0 %v363
      %393 = vmatpush.bf16.msra.mxu0 %v361
      %394 = vmatpush.bf16.msra.mxu0 %v359
      %395 = vmatpush.bf16.msra.mxu0 %v357
      %396 = vmatmul.bf16.gmra.mxu0 %v383
      %v397 = vpop.f32.mrf.mxu0
      %v398 = vadd.f32 0.0, %v397
      %v399 = vpop.f32.mrf.mxu0
      %v400 = vadd.f32 0.0, %v399
      %401 = vmatmul.bf16.gmra.mxu0 %v386
      %v402 = vpop.f32.mrf.mxu0
      %v403 = vadd.f32 0.0, %v402
      %v404 = vpop.f32.mrf.mxu0
      %v405 = vadd.f32 0.0, %v404
      %406 = vdwg.mxu0
      %407 = vmatpush.bf16.msra.mxu0 0
      %408 = vmatpush.bf16.msra.mxu0 0
      %409 = vmatpush.bf16.msra.mxu0 %v368
      %410 = vmatpush.bf16.msra.mxu0 %v366
      %411 = vmatpush.bf16.msra.mxu0 %v364
      %412 = vmatpush.bf16.msra.mxu0 %v362
      %413 = vmatpush.bf16.msra.mxu0 %v360
      %414 = vmatpush.bf16.msra.mxu0 %v358
      %415 = vmatmul.bf16.gmra.mxu0 %v383
      %v416 = vpop.f32.mrf.mxu0
      %v417 = vadd.f32 0.0, %v416
      %v418 = vpop.f32.mrf.mxu0
      %v419 = vadd.f32 0.0, %v418
      %420 = vmatmul.bf16.gmra.mxu0 %v386
      %v421 = vpop.f32.mrf.mxu0
      %v422 = vadd.f32 0.0, %v421
      %v423 = vpop.f32.mrf.mxu0
      %v424 = vadd.f32 0.0, %v423
      %425 = vdwg.mxu0
      %v430 = vunpack.c.l.b16 %v285
      %v431 = vunpack.c.l.b16 %v286
      %v432 = vunpack.c.l.b16 %v287
      %v433 = vunpack.c.l.b16 %v288
      %v434 = vpack.c.b16 %v431, %v430
      %v435 = vpack.c.b16 %v433, %v432
      %v437 = vsel %vm381, %v434, 0
      %v440 = vsel %vm381, %v435, 0
      %442 = vmatpush.bf16.msra.mxu0 0
      %443 = vmatpush.bf16.msra.mxu0 0
      %444 = vmatpush.bf16.msra.mxu0 %v367
      %445 = vmatpush.bf16.msra.mxu0 %v365
      %446 = vmatpush.bf16.msra.mxu0 %v363
      %447 = vmatpush.bf16.msra.mxu0 %v361
      %448 = vmatpush.bf16.msra.mxu0 %v359
      %449 = vmatpush.bf16.msra.mxu0 %v357
      %450 = vmatmul.bf16.gmra.mxu0 %v437
      %v451 = vpop.f32.mrf.mxu0
      %v452 = vadd.f32 %v398, %v451
      %v453 = vpop.f32.mrf.mxu0
      %v454 = vadd.f32 %v400, %v453
      %455 = vmatmul.bf16.gmra.mxu0 %v440
      %v456 = vpop.f32.mrf.mxu0
      %v457 = vadd.f32 %v403, %v456
      %v458 = vpop.f32.mrf.mxu0
      %v459 = vadd.f32 %v405, %v458
      %460 = vdwg.mxu0
      %461 = vmatpush.bf16.msra.mxu0 0
      %462 = vmatpush.bf16.msra.mxu0 0
      %463 = vmatpush.bf16.msra.mxu0 %v368
      %464 = vmatpush.bf16.msra.mxu0 %v366
      %465 = vmatpush.bf16.msra.mxu0 %v364
      %466 = vmatpush.bf16.msra.mxu0 %v362
      %467 = vmatpush.bf16.msra.mxu0 %v360
      %468 = vmatpush.bf16.msra.mxu0 %v358
      %469 = vmatmul.bf16.gmra.mxu0 %v437
      %v470 = vpop.f32.mrf.mxu0
      %v471 = vadd.f32 %v417, %v470
      %v472 = vpop.f32.mrf.mxu0
      %v473 = vadd.f32 %v419, %v472
      %474 = vmatmul.bf16.gmra.mxu0 %v440
      %v475 = vpop.f32.mrf.mxu0
      %v476 = vadd.f32 %v422, %v475
      %v477 = vpop.f32.mrf.mxu0
      %v478 = vadd.f32 %v424, %v477
      %479 = vdwg.mxu0
      %v481 = vsel %vm381, %v309, 0
      %v484 = vsel %vm381, %v310, 0
      %486 = vmatpush.bf16.msra.mxu0 0
      %487 = vmatpush.bf16.msra.mxu0 0
      %488 = vmatpush.bf16.msra.mxu0 %v367
      %489 = vmatpush.bf16.msra.mxu0 %v365
      %490 = vmatpush.bf16.msra.mxu0 %v363
      %491 = vmatpush.bf16.msra.mxu0 %v361
      %492 = vmatpush.bf16.msra.mxu0 %v359
      %493 = vmatpush.bf16.msra.mxu0 %v357
      %494 = vmatmul.bf16.gmra.mxu0 %v481
      %v495 = vpop.f32.mrf.mxu0
      %v496 = vadd.f32 0.0, %v495
      %v497 = vpop.f32.mrf.mxu0
      %v498 = vadd.f32 0.0, %v497
      %499 = vmatmul.bf16.gmra.mxu0 %v484
      %v500 = vpop.f32.mrf.mxu0
      %v501 = vadd.f32 0.0, %v500
      %v502 = vpop.f32.mrf.mxu0
      %v503 = vadd.f32 0.0, %v502
      %504 = vdwg.mxu0
      %505 = vmatpush.bf16.msra.mxu0 0
      %506 = vmatpush.bf16.msra.mxu0 0
      %507 = vmatpush.bf16.msra.mxu0 %v368
      %508 = vmatpush.bf16.msra.mxu0 %v366
      %509 = vmatpush.bf16.msra.mxu0 %v364
      %510 = vmatpush.bf16.msra.mxu0 %v362
      %511 = vmatpush.bf16.msra.mxu0 %v360
      %512 = vmatpush.bf16.msra.mxu0 %v358
      %513 = vmatmul.bf16.gmra.mxu0 %v481
      %v514 = vpop.f32.mrf.mxu0
      %v515 = vadd.f32 0.0, %v514
      %v516 = vpop.f32.mrf.mxu0
      %v517 = vadd.f32 0.0, %v516
      %518 = vmatmul.bf16.gmra.mxu0 %v484
      %v519 = vpop.f32.mrf.mxu0
      %v520 = vadd.f32 0.0, %v519
      %v521 = vpop.f32.mrf.mxu0
      %v522 = vadd.f32 0.0, %v521
      %523 = vdwg.mxu0
      %v524 = vadd.f32 %v452, %v496
      %v525 = vadd.f32 %v471, %v515
      %v526 = vadd.f32 %v454, %v498
      %v527 = vadd.f32 %v473, %v517
      %v528 = vadd.f32 %v457, %v501
      %v529 = vadd.f32 %v476, %v520
      %v530 = vadd.f32 %v459, %v503
      %v531 = vadd.f32 %v478, %v522
      %532 = vst [vmem:[%s147] sm:$0xff] %v524
      %533 = vst [vmem:[%s147 + $0x8] sm:$0xff] %v525
      %534 = vst [vmem:[%s147 + $0x10] sm:$0xff] %v526
      %535 = vst [vmem:[%s147 + $0x18] sm:$0xff] %v527
      %536 = vst [vmem:[%s147 + $0x20] sm:$0xff] %v528
      %537 = vst [vmem:[%s147 + $0x28] sm:$0xff] %v529
      %538 = vst [vmem:[%s147 + $0x30] sm:$0xff] %v530
      %539 = vst [vmem:[%s147 + $0x38] sm:$0xff] %v531
      %s540 = smul.u32 4, %s13
      %p541 = scmp.lt.s32.totalorder %s540, 15
      %s542 = scalar_select %p541, %s540, 15
      %s543 = smul.addr %s542, 2
      %s544 = smul.addr %s543, 8
      %s545 = scalar_lea.vmem %s2, %s544
      // Predicated region
      $region29: #{trilinear_up.1} parent=27 // pred_check
        %p546 = pneg %p78
      $region30: #{trilinear_up.1} parent=27 // pred_check_branch
        %548 = sbr.rel (%p546) target = $region32
      $region31: #{trilinear_up.1} parent=27 // pred_region
        %s549 = smul.u32 4, %s13
      $region32: #{trilinear_up.1} parent=27 // pred_fallthru
        _
    $region28: #{trilinear_up.1} parent=5 // pred_fallthru
      _
    %p550 = scmp.le.s32.totalorder 2, %s8
    // Predicated region
    $region33: #{trilinear_up.1} parent=5 // pred_check
      %p551 = pneg %p550
    $region34: #{trilinear_up.1} parent=5 // pred_check_branch
      %553 = sbr.rel (%p551) target = $region36
    $region35: #{trilinear_up.1} parent=5 // pred_region
      %s554 = ssub.s32 %s8, 2
      // Predicated region
      $region37: #{trilinear_up.1} parent=35 // pred_check
        %p555 = pneg %p84
      $region38: #{trilinear_up.1} parent=35 // pred_check_branch
        %557 = sbr.rel (%p555) target = $region40
      $region39: #{trilinear_up.1} parent=35 // pred_region
        %s558 = smul.u32 4, %s14
        %p559 = scmp.lt.s32.totalorder %s558, 15
        %s560 = scalar_select %p559, %s558, 15
        %s561 = smul.addr %s560, 2
        %s562 = smul.addr %s561, 8
        %s563 = scalar_lea.vmem %s2, %s562
      $region40: #{trilinear_up.1} parent=35 // pred_fallthru
        _
    $region36: #{trilinear_up.1} parent=5 // pred_fallthru
      _
  $region6: #{trilinear_up.1} parent=0 // loop_footer
    %s12 = sadd.s32 1, %s8
  $region7: #{trilinear_up.1} parent=0 // loop_footer_branch
    %7 = sbr.rel target = $region3
  $region8: #{trilinear_up.1} parent=0 // loop_exit
    _

</llo_original>
